<compile_context>
chip_gen: v6e
topology: v6e:2x2x1
jax: 0.10.0
libtpu: 0.0.40
codegen_flags: <defaults>
</compile_context>

<pallas_src>
import functools
import numpy as np

import jax
import jax.numpy as jnp
from jax import lax
from jax.experimental import pallas as pl
from jax.experimental.pallas import tpu as pltpu


_VMEM_LIMIT = 48 * 1024 * 1024     # > scoped default, < v7x 64 MiB physical


# ----------------------------------------------------------------------------
# Shape bucketing helpers (kills per-iteration Mosaic recompiles)
# ----------------------------------------------------------------------------
def _next_pow2(v):
    return 1 << (int(v) - 1).bit_length()


def _bucket(n, k):
    """Pad a node count to a small reused set of sizes: power of 2, >=8, >=k."""
    return _next_pow2(max(int(n), int(k), 8))


# ----------------------------------------------------------------------------
# Fused multi-layer MLP kernel (input net / output net)
# ----------------------------------------------------------------------------
def _mlp_kernel(*refs, acts):
    """y = actN(...act1(x @ W1 + b1)... @ WN + bN) on one row tile."""
    x_ref, o_ref = refs[0], refs[-1]
    wb = refs[1:-1]
    y = x_ref[...].astype(jnp.float32)
    for i, act in enumerate(acts):
        y = jnp.dot(y, wb[2 * i][...], preferred_element_type=jnp.float32)
        y = y + wb[2 * i + 1][...]
        if act == "tanh":
            y = jnp.tanh(y)
        elif act == "relu":
            y = jnp.maximum(y, 0.0)
    o_ref[...] = y.astype(o_ref.dtype)


@functools.lru_cache(maxsize=None)
def _make_mlp_fn(npad, tile, dims, acts):
    # TODO(synk): resident weights/biases could be single-buffered
    # (pipeline_mode=pl.Buffered(1)) to save a little VMEM on v7x.
    in_specs = [pl.BlockSpec((tile, dims[0][0]), lambda i: (i, 0))]
    for (din, dout) in dims:
        in_specs.append(pl.BlockSpec((din, dout), lambda i: (0, 0)))   # weight
        in_specs.append(pl.BlockSpec((1, dout), lambda i: (0, 0)))     # bias
    call = pl.pallas_call(
        functools.partial(_mlp_kernel, acts=acts),
        out_shape=jax.ShapeDtypeStruct((npad, dims[-1][1]), jnp.float32),
        grid_spec=pltpu.PrefetchScalarGridSpec(
            num_scalar_prefetch=0,
            grid=(npad // tile,),
            in_specs=in_specs,
            out_specs=pl.BlockSpec((tile, dims[-1][1]), lambda i: (i, 0)),
        ),
        compiler_params=pltpu.CompilerParams(
            dimension_semantics=("parallel",),
            vmem_limit_bytes=_VMEM_LIMIT),
    )
    return jax.jit(call)


def fused_mlp(x, weights, biases, acts, tile_m=256):
    """Whole Linear(+act) stack in a single Pallas kernel over row tiles."""
    n = x.shape[0]
    npad = max(8, -(-n // 8) * 8)
    tile = min(tile_m, npad)                  # <=256 keeps v5e out of spills
    npad = -(-npad // tile) * tile
    xp = jnp.zeros((npad, x.shape[1]), jnp.float32).at[:n].set(x.astype(jnp.float32))
    dims = tuple((int(w.shape[0]), int(w.shape[1])) for w in weights)
    fn = _make_mlp_fn(npad, tile, dims, tuple(acts))
    args = [xp]
    for w, b in zip(weights, biases):
        args.append(w.astype(jnp.float32))
        args.append(b.reshape(1, -1).astype(jnp.float32))
    return fn(*args)[:n]     # padded rows (tanh(b)/relu(b) garbage) sliced off


# ----------------------------------------------------------------------------
# Pairwise squared distances with kNN fused in-kernel (row-tiled, NT matmul)
# ----------------------------------------------------------------------------
def _pdist_knn_kernel(scal_ref, hrow_ref, hfull_ref, nbr_ref, *, tile_r, n_pad, k):
    n = scal_ref[0]
    hr = hrow_ref[...]                                               # [tr, h]
    hf = hfull_ref[...]                                              # [np, h]
    sq_r = jnp.sum(hr * hr, axis=-1, keepdims=True)                  # [tr, 1]
    sq_c = jnp.transpose(jnp.sum(hf * hf, axis=-1, keepdims=True))   # [1, np]
    # NT contraction: no explicit transpose of hf before the MXU.
    g = lax.dot_general(hr, hf, (((1,), (1,)), ((), ())),
                        preferred_element_type=jnp.float32)          # [tr, np]
    d = sq_r + sq_c - 2.0 * g
    ri = pl.program_id(0) * tile_r + lax.broadcasted_iota(jnp.int32, (tile_r, n_pad), 0)
    ci = lax.broadcasted_iota(jnp.int32, (tile_r, n_pad), 1)
    ci_f = ci.astype(jnp.float32)
    d = jnp.where((ri == ci) | (ci >= n), 1e30, d)                   # mask self + pad

    # k passes of running min / arg-min held in vregs -> no HBM distance matrix
    # and no XLA top_k.  Distance compares stay in f32 (tie stability).
    col_k = lax.broadcasted_iota(jnp.int32, (tile_r, k), 1)
    nbr = jnp.zeros((tile_r, k), jnp.int32)
    for j in range(k):
        mn = jnp.min(d, axis=-1, keepdims=True)                      # [tr, 1]
        idx_f = jnp.min(jnp.where(d == mn, ci_f, float(n_pad)),
                        axis=-1, keepdims=True)                      # lowest tied idx
        idx = idx_f.astype(jnp.int32)
        nbr = jnp.where(col_k == j, idx, nbr)
        d = jnp.where(ci == idx, 1e30, d)                            # remove picked col
    nbr_ref[...] = nbr


# ----------------------------------------------------------------------------
# EdgeConv: message MLP + masked 'add' aggregation (row-tiled over targets)
# ----------------------------------------------------------------------------
def _econv_kernel(scal_ref, h_ref, hn_ref, w1ab_ref, b1_ref, w1b_ref,
                  w2_ref, b2_ref, hp_ref, *, k, tile_t):
    n = scal_ref[0]            # true node count
    kk = scal_ref[1]           # true neighbour count = min(k, n-1)
    Ht = h_ref[...]                                                  # [tt, h]
    h_dim = Ht.shape[1]
    # relu([h_t, h_s - h_t] @ W1 + b1) == relu(h_t@(W1a-W1b) + h_s@W1b + b1)
    base = jnp.dot(Ht, w1ab_ref[...], preferred_element_type=jnp.float32) + b1_ref[...]
    row = pl.program_id(0) * tile_t + lax.broadcasted_iota(jnp.int32, (tile_t, 1), 0)
    valid_t = row < n
    acc = jnp.zeros((tile_t, h_dim), jnp.float32)
    # TODO(synk): the k per-neighbour matmul pairs could be M-batched into one
    # [k*tile_t, h] @ [h, mid] by collapsing hn's leading dim (bigger MXU fill).
    for j in range(k):
        hs = hn_ref[j]                                               # [tt, h]
        h1 = jnp.maximum(
            base + jnp.dot(hs, w1b_ref[...], preferred_element_type=jnp.float32), 0.0)
        msg = jnp.maximum(
            jnp.dot(h1, w2_ref[...], preferred_element_type=jnp.float32) + b2_ref[...],
            0.0)
        mask = jnp.where(jnp.logical_and(valid_t, j < kk), 1.0, 0.0)
        acc = acc + msg * mask                                       # 'add' aggregation
    hp_ref[...] = acc


# ----------------------------------------------------------------------------
# EdgePooling score head: lin([Hp[src], Hp[dst]]) -> per-target softmax + 0.5
# ----------------------------------------------------------------------------
def _score_kernel(scal_ref, hpf_ref, hpt_ref, nbr_ref, wps_ref, wpd_ref, bp_ref,
                  sc_ref, *, k, tile_t, n_pad):
    n = scal_ref[0]
    kk = scal_ref[1]
    Hp_all = hpf_ref[...]                                            # [np, h]
    Hp_t = hpt_ref[...]                                              # [tt, h]
    # s_src per node, laid along lanes so a compare/select gather works.
    s_lane = jnp.transpose(jnp.sum(Hp_all * wps_ref[...], axis=-1, keepdims=True))  # [1,np]
    s_dst = jnp.sum(Hp_t * wpd_ref[...], axis=-1, keepdims=True)     # [tt, 1]
    nbr = nbr_ref[...]                                               # [tt, k] int32
    col_np = lax.broadcasted_iota(jnp.int32, (tile_t, n_pad), 1)
    col_k = lax.broadcasted_iota(jnp.int32, (tile_t, k), 1)
    row = pl.program_id(0) * tile_t + lax.broadcasted_iota(jnp.int32, (tile_t, k), 0)
    raw = jnp.zeros((tile_t, k), jnp.float32)
    for j in range(k):
        nbr_j = nbr[:, j:j + 1]                                      # [tt, 1]
        g = jnp.sum(jnp.where(nbr_j == col_np, s_lane, 0.0),
                    axis=-1, keepdims=True)                          # s_src[nbr_j]
        raw = raw + jnp.where(col_k == j, g, 0.0)
    raw = raw + s_dst + bp_ref[...]
    valid = jnp.logical_and(row < n, col_k < kk)
    raw = jnp.where(valid, raw, -1e30)
    mx = jnp.max(raw, axis=-1, keepdims=True)
    e = jnp.where(valid, jnp.exp(raw - mx), 0.0)
    den = jnp.maximum(jnp.sum(e, axis=-1, keepdims=True), 1e-30)
    sc_ref[...] = e / den + 0.5


@functools.lru_cache(maxsize=None)
def _make_iter_fn(n_pad, h, mid, k):
    """One coarsening step on a padded graph: pdist+kNN -> gather -> EdgeConv -> score."""
    tile = min(n_pad, 128)
    cp = pltpu.CompilerParams(dimension_semantics=("parallel",),
                              vmem_limit_bytes=_VMEM_LIMIT)

    pdist_knn = pl.pallas_call(
        functools.partial(_pdist_knn_kernel, tile_r=tile, n_pad=n_pad, k=k),
        out_shape=jax.ShapeDtypeStruct((n_pad, k), jnp.int32),
        grid_spec=pltpu.PrefetchScalarGridSpec(
            num_scalar_prefetch=1,
            grid=(n_pad // tile,),
            in_specs=[pl.BlockSpec((tile, h), lambda i, s: (i, 0)),
                      pl.BlockSpec((n_pad, h), lambda i, s: (0, 0))],
            out_specs=pl.BlockSpec((tile, k), lambda i, s: (i, 0)),
        ),
        compiler_params=cp,
    )

    econv = pl.pallas_call(
        functools.partial(_econv_kernel, k=k, tile_t=tile),
        out_shape=jax.ShapeDtypeStruct((n_pad, h), jnp.float32),
        grid_spec=pltpu.PrefetchScalarGridSpec(
            num_scalar_prefetch=1,
            grid=(n_pad // tile,),
            in_specs=[pl.BlockSpec((tile, h), lambda i, s: (i, 0)),
                      pl.BlockSpec((k, tile, h), lambda i, s: (0, i, 0)),
                      pl.BlockSpec((h, mid), lambda i, s: (0, 0)),
                      pl.BlockSpec((1, mid), lambda i, s: (0, 0)),
                      pl.BlockSpec((h, mid), lambda i, s: (0, 0)),
                      pl.BlockSpec((mid, h), lambda i, s: (0, 0)),
                      pl.BlockSpec((1, h), lambda i, s: (0, 0))],
            out_specs=pl.BlockSpec((tile, h), lambda i, s: (i, 0)),
        ),
        compiler_params=cp,
    )

    score = pl.pallas_call(
        functools.partial(_score_kernel, k=k, tile_t=tile, n_pad=n_pad),
        out_shape=jax.ShapeDtypeStruct((n_pad, k), jnp.float32),
        grid_spec=pltpu.PrefetchScalarGridSpec(
            num_scalar_prefetch=1,
            grid=(n_pad // tile,),
            in_specs=[pl.BlockSpec((n_pad, h), lambda i, s: (0, 0)),
                      pl.BlockSpec((tile, h), lambda i, s: (i, 0)),
                      pl.BlockSpec((tile, k), lambda i, s: (i, 0)),
                      pl.BlockSpec((1, h), lambda i, s: (0, 0)),
                      pl.BlockSpec((1, h), lambda i, s: (0, 0)),
                      pl.BlockSpec((1, 1), lambda i, s: (0, 0))],
            out_specs=pl.BlockSpec((tile, k), lambda i, s: (i, 0)),
        ),
        compiler_params=cp,
    )

    # TODO(synk): MXU operands could be bf16 (f32 accumulate) for large graphs;
    # kept f32 so kNN / greedy-merge decisions match the f32 reference exactly.
    def run(scal, Hpad, w1ab, b1, w1b, w2, b2, wps, wpd, bp):
        nbr = pdist_knn(scal, Hpad, Hpad)                           # [np, k] int32
        # Neighbour row gather done once by XLA (O(k*n*h) bytes), no one-hot matmul.
        Hn = jnp.take(Hpad, jnp.transpose(nbr), axis=0, mode="clip")  # [k, np, h]
        Hp = econv(scal, Hpad, Hn, w1ab, b1, w1b, w2, b2)           # [np, h]
        sc = score(scal, Hp, Hp, nbr, wps, wpd, bp)                 # [np, k]
        return nbr, sc, Hp

    return jax.jit(run)


# ----------------------------------------------------------------------------
# Cluster pooling: scatter_add(score * Hp, cluster) with the one-hot built
# on-device from O(n) cluster ids (no dense host->device pooling matrix)
# ----------------------------------------------------------------------------
def _pool_kernel(cl_ref, ns_ref, hp_ref, out_ref, *, tile_c, n_pad):
    row_c = pl.program_id(0) * tile_c + lax.broadcasted_iota(
        jnp.int32, (tile_c, n_pad), 0)
    P = jnp.where(cl_ref[...] == row_c, 1.0, 0.0)                   # [tc, np]
    out_ref[...] = ns_ref[...] * jnp.dot(P, hp_ref[...],
                                         preferred_element_type=jnp.float32)


@functools.lru_cache(maxsize=None)
def _make_pool_fn(next_pad, n_pad, h):
    tile_c = min(next_pad, 128)
    call = pl.pallas_call(
        functools.partial(_pool_kernel, tile_c=tile_c, n_pad=n_pad),
        out_shape=jax.ShapeDtypeStruct((next_pad, h), jnp.float32),
        grid=(next_pad // tile_c,),
        in_specs=[pl.BlockSpec((1, n_pad), lambda i: (0, 0)),        # cluster ids
                  pl.BlockSpec((tile_c, 1), lambda i: (i, 0)),       # new scores
                  pl.BlockSpec((n_pad, h), lambda i: (0, 0))],       # Hp (resident)
        out_specs=pl.BlockSpec((tile_c, h), lambda i: (i, 0)),
        compiler_params=pltpu.CompilerParams(
            dimension_semantics=("parallel",),
            vmem_limit_bytes=_VMEM_LIMIT),
    )
    return jax.jit(call)


# ----------------------------------------------------------------------------
# Host-side piece with no clean Pallas equivalent
# ----------------------------------------------------------------------------
def _greedy_merge(src, dst, score, num_nodes):
    """EdgePooling.__merge_edges__: greedy maximal matching by descending score."""
    # TODO(synk): sequential data-dependent edge contraction has no clean Pallas
    # equivalent; executed on host (numpy), matching PyG EdgePooling semantics.
    order = np.argsort(-score, kind="stable")
    remaining = np.ones(num_nodes, dtype=bool)
    cluster = np.full(num_nodes, -1, dtype=np.int64)
    new_scores = []
    c = 0
    for eidx in order:
        s = int(src[eidx])
        t = int(dst[eidx])
        if not (remaining[s] and remaining[t]):
            continue
        cluster[s] = c
        cluster[t] = c
        remaining[s] = False
        remaining[t] = False
        new_scores.append(float(score[eidx]))
        c += 1
    for node in range(num_nodes):
        if remaining[node]:
            cluster[node] = c
            new_scores.append(1.0)      # unmatched nodes keep score 1
            c += 1
    return cluster, np.asarray(new_scores, dtype=np.float32), c


# ----------------------------------------------------------------------------
# Parameters (deterministic, PyTorch-Linear-style init)
# ----------------------------------------------------------------------------
def _init_linear(key, din, dout):
    kw, kb = jax.random.split(key)
    bound = 1.0 / np.sqrt(din)
    w = jax.random.uniform(kw, (din, dout), jnp.float32, -bound, bound)
    b = jax.random.uniform(kb, (dout,), jnp.float32, -bound, bound)
    return w, b


def init_params(key, input_dim=5, hidden_dim=32, output_dim=1):
    h = hidden_dim
    layer_dims = {
        "in1": (input_dim, 2 * h), "in2": (2 * h, 2 * h), "in3": (2 * h, h),
        "ec1": (2 * h, 3 * h // 2), "ec2": (3 * h // 2, h),
        "pool": (2 * h, 1),
        "o1": (h, 2 * h), "o2": (2 * h, 2 * h), "o3": (2 * h, h),
        "o4": (h, h // 2), "o5": (h // 2, output_dim),
    }
    keys = jax.random.split(key, len(layer_dims))
    params = {}
    for kkey, (name, (din, dout)) in zip(keys, layer_dims.items()):
        w, b = _init_linear(kkey, din, dout)
        params[name + "_w"] = w
        params[name + "_b"] = b
    params["datanorm"] = jnp.array(
        [1.0 / 500.0, 1.0 / 500.0, 1.0 / 54.0, 1.0 / 25.0, 1.0 / 1000.0],
        jnp.float32)
    return params


# ----------------------------------------------------------------------------
# DynamicReductionNetwork forward
# ----------------------------------------------------------------------------
def drn_forward(params, x, batch, k=8):
    h = int(params["in3_w"].shape[1])
    mid = int(params["ec1_w"].shape[1])

    # datanorm * x folded exactly into the first Linear: (norm*x)@W == x@(diag(norm)@W)
    w_in1 = params["in1_w"] * params["datanorm"][:, None]
    H = fused_mlp(
        x,
        [w_in1, params["in2_w"], params["in3_w"]],
        [params["in1_b"], params["in2_b"], params["in3_b"]],
        ("tanh", "tanh", "tanh"))

    # EdgeConv / EdgePooling weights prepared once (W1 / pool_w split so no
    # kernel ever concatenates along lanes).
    w1a = params["ec1_w"][:h]
    w1b = params["ec1_w"][h:]
    w1ab = w1a - w1b            # [h_t, h_s-h_t]@W1 = h_t@(W1a-W1b) + h_s@W1b
    b1 = params["ec1_b"].reshape(1, -1)
    w2 = params["ec2_w"]
    b2 = params["ec2_b"].reshape(1, -1)
    wps = params["pool_w"][:h].reshape(1, h)
    wpd = params["pool_w"][h:].reshape(1, h)
    bp = params["pool_b"].reshape(1, 1)

    batch_np = np.asarray(batch)
    states = []
    for b in np.unique(batch_np):
        idx = np.nonzero(batch_np == b)[0]
        n = int(idx.size)
        n_pad = _bucket(n, k)
        H_pad = jnp.zeros((n_pad, h), jnp.float32).at[:n].set(H[jnp.asarray(idx)])
        states.append({"n": n, "n_pad": n_pad, "H": H_pad})

    # Round-robin coarsening: dispatch every active graph's device work first,
    # then run the host greedy merges -> host Python overlaps device execution
    # instead of serializing behind each device_get.  All device shapes are
    # bucketed so the (lru-cached, jitted) Pallas kernels are reused.
    while any(s["n"] > 1 for s in states):
        pend = []
        for s in states:
            if s["n"] <= 1:
                continue
            n, n_pad = s["n"], s["n_pad"]
            kk = int(min(k, n - 1))
            scal = jnp.array([n, kk], jnp.int32)       # true sizes, SMEM-prefetched
            it_fn = _make_iter_fn(n_pad, h, mid, k)
            nbr_d, sc_d, Hp_d = it_fn(scal, s["H"], w1ab, b1, w1b, w2, b2,
                                      wps, wpd, bp)
            # Device-side slice to true sizes before the host transfer.
            pend.append((s, kk, nbr_d[:n, :kk], sc_d[:n, :kk], Hp_d))

        for s, kk, nbr_s, sc_s, Hp_d in pend:
            n, n_pad = s["n"], s["n_pad"]
            nbr_np, sc_np = jax.device_get((nbr_s, sc_s))
            src = nbr_np.reshape(-1)                   # edge_index[0] (sources)
            dst = np.repeat(np.arange(n), kk)          # edge_index[1] (targets)
            cluster, new_score, c = _greedy_merge(src, dst, sc_np.reshape(-1), n)

            # Upload only O(n) bookkeeping; the pooling one-hot is built on device.
            next_pad = _bucket(c, k)
            cl_pad = np.full((1, n_pad), -1, np.int32)
            cl_pad[0, :n] = cluster
            ns_pad = np.zeros((next_pad, 1), np.float32)
            ns_pad[:c, 0] = new_score
            s["H"] = _make_pool_fn(next_pad, n_pad, h)(
                jnp.asarray(cl_pad), jnp.asarray(ns_pad), Hp_d)
            s["n"], s["n_pad"] = c, next_pad

    out = jnp.concatenate([s["H"][:1] for s in states], axis=0)   # [num_graphs, hidden]
    out = fused_mlp(
        out,
        [params["o1_w"], params["o2_w"], params["o3_w"], params["o4_w"], params["o5_w"]],
        [params["o1_b"], params["o2_b"], params["o3_b"], params["o4_b"], params["o5_b"]],
        ("relu", "relu", "relu", "relu", "none"))
    return jnp.squeeze(out, axis=-1)


# ----------------------------------------------------------------------------
if __name__ == "__main__":
    key = jax.random.PRNGKey(0)
    input_dim, hidden_dim, output_dim, k = 5, 32, 1, 3

    pkey, xkey = jax.random.split(key)
    params = init_params(pkey, input_dim, hidden_dim, output_dim)

    # Two small point clouds ("graphs"): 10 and 7 nodes, 5 features each.
    n0, n1 = 10, 7
    x = jax.random.uniform(xkey, (n0 + n1, input_dim), jnp.float32,
                           minval=0.0, maxval=100.0)
    batch = jnp.array([0] * n0 + [1] * n1, dtype=jnp.int32)

    out = drn_forward(params, x, batch, k=k)
    out = jax.block_until_ready(out)
    assert out.shape == (2,)
    print("KERNEL_OK")
</pallas_src>

<mosaic_0001>
module attributes {stable_mosaic.version = 11 : i64} {
  func.func @_mlp_kernel(%arg0: i32, %arg1: memref<24x5xf32, #tpu.memory_space<vmem>>, %arg2: memref<5x64xf32, #tpu.memory_space<vmem>>, %arg3: memref<1x64xf32, #tpu.memory_space<vmem>>, %arg4: memref<64x64xf32, #tpu.memory_space<vmem>>, %arg5: memref<1x64xf32, #tpu.memory_space<vmem>>, %arg6: memref<64x32xf32, #tpu.memory_space<vmem>>, %arg7: memref<1x32xf32, #tpu.memory_space<vmem>>, %arg8: memref<24x32xf32, #tpu.memory_space<vmem>>) attributes {dimension_semantics = [#tpu.dimension_semantics<parallel>], iteration_bounds = array<i64: 1>, scalar_prefetch = 0 : i64, scratch_operands = 0 : i64, tpu.core_type = #tpu.core_type<tc>, window_params = [{transform_indices = @transform_0, window_bounds = array<i64: 24, 5>}, {pipeline_mode = #tpu.pipeline_mode<synchronous>, transform_indices = @transform_1, window_bounds = array<i64: 5, 64>}, {pipeline_mode = #tpu.pipeline_mode<synchronous>, transform_indices = @transform_2, window_bounds = array<i64: 1, 64>}, {pipeline_mode = #tpu.pipeline_mode<synchronous>, transform_indices = @transform_3, window_bounds = array<i64: 64, 64>}, {pipeline_mode = #tpu.pipeline_mode<synchronous>, transform_indices = @transform_4, window_bounds = array<i64: 1, 64>}, {pipeline_mode = #tpu.pipeline_mode<synchronous>, transform_indices = @transform_5, window_bounds = array<i64: 64, 32>}, {pipeline_mode = #tpu.pipeline_mode<synchronous>, transform_indices = @transform_6, window_bounds = array<i64: 1, 32>}, {transform_indices = @transform_7, window_bounds = array<i64: 24, 32>}]} {
    %c0 = arith.constant 0 : index
    %c0_0 = arith.constant 0 : index
    %0 = vector.load %arg1[%c0, %c0_0] : memref<24x5xf32, #tpu.memory_space<vmem>>, vector<24x5xf32>
    %c0_1 = arith.constant 0 : index
    %c0_2 = arith.constant 0 : index
    %1 = vector.load %arg2[%c0_1, %c0_2] : memref<5x64xf32, #tpu.memory_space<vmem>>, vector<5x64xf32>
    %cst = arith.constant dense<0.000000e+00> : vector<24x64xf32>
    %2 = tpu.matmul %0, %1, %cst {dimension_numbers = #tpu.dot_dimension_numbers<[1], [0], [0], [1], [0, 0, 1, 1], [], []>} : vector<24x5xf32>, vector<5x64xf32>, vector<24x64xf32> -> vector<24x64xf32>
    %c0_3 = arith.constant 0 : index
    %c0_4 = arith.constant 0 : index
    %3 = vector.load %arg3[%c0_3, %c0_4] : memref<1x64xf32, #tpu.memory_space<vmem>>, vector<1x64xf32>
    %4 = vector.broadcast %3 : vector<1x64xf32> to vector<24x64xf32>
    %5 = arith.addf %2, %4 : vector<24x64xf32>
    %6 = math.tanh %5 : vector<24x64xf32>
    %c0_5 = arith.constant 0 : index
    %c0_6 = arith.constant 0 : index
    %7 = vector.load %arg4[%c0_5, %c0_6] : memref<64x64xf32, #tpu.memory_space<vmem>>, vector<64x64xf32>
    %cst_7 = arith.constant dense<0.000000e+00> : vector<24x64xf32>
    %8 = tpu.matmul %6, %7, %cst_7 {dimension_numbers = #tpu.dot_dimension_numbers<[1], [0], [0], [1], [0, 0, 1, 1], [], []>} : vector<24x64xf32>, vector<64x64xf32>, vector<24x64xf32> -> vector<24x64xf32>
    %c0_8 = arith.constant 0 : index
    %c0_9 = arith.constant 0 : index
    %9 = vector.load %arg5[%c0_8, %c0_9] : memref<1x64xf32, #tpu.memory_space<vmem>>, vector<1x64xf32>
    %10 = vector.broadcast %9 : vector<1x64xf32> to vector<24x64xf32>
    %11 = arith.addf %8, %10 : vector<24x64xf32>
    %12 = math.tanh %11 : vector<24x64xf32>
    %c0_10 = arith.constant 0 : index
    %c0_11 = arith.constant 0 : index
    %13 = vector.load %arg6[%c0_10, %c0_11] : memref<64x32xf32, #tpu.memory_space<vmem>>, vector<64x32xf32>
    %cst_12 = arith.constant dense<0.000000e+00> : vector<24x32xf32>
    %14 = tpu.matmul %12, %13, %cst_12 {dimension_numbers = #tpu.dot_dimension_numbers<[1], [0], [0], [1], [0, 0, 1, 1], [], []>} : vector<24x64xf32>, vector<64x32xf32>, vector<24x32xf32> -> vector<24x32xf32>
    %c0_13 = arith.constant 0 : index
    %c0_14 = arith.constant 0 : index
    %15 = vector.load %arg7[%c0_13, %c0_14] : memref<1x32xf32, #tpu.memory_space<vmem>>, vector<1x32xf32>
    %16 = vector.broadcast %15 : vector<1x32xf32> to vector<24x32xf32>
    %17 = arith.addf %14, %16 : vector<24x32xf32>
    %18 = math.tanh %17 : vector<24x32xf32>
    %c0_15 = arith.constant 0 : index
    %c0_16 = arith.constant 0 : index
    %19 = vector.load %arg8[%c0_15, %c0_16] : memref<24x32xf32, #tpu.memory_space<vmem>>, vector<24x32xf32>
    tpu.vector_store %arg8[%c0_15, %c0_16], %18 {strides = array<i32>} : memref<24x32xf32, #tpu.memory_space<vmem>>, vector<24x32xf32>,
    return
  }
  func.func @transform_0(%arg0: i32) -> (i32, i32) {
    %c0_i32 = arith.constant 0 : i32
    %c0_i32_0 = arith.constant 0 : i32
    return %arg0, %c0_i32 : i32, i32
  }
  func.func @transform_1(%arg0: i32) -> (i32, i32) {
    %c0_i32 = arith.constant 0 : i32
    %c0_i32_0 = arith.constant 0 : i32
    %c0_i32_1 = arith.constant 0 : i32
    return %c0_i32, %c0_i32_0 : i32, i32
  }
  func.func @transform_2(%arg0: i32) -> (i32, i32) {
    %c0_i32 = arith.constant 0 : i32
    %c0_i32_0 = arith.constant 0 : i32
    %c0_i32_1 = arith.constant 0 : i32
    return %c0_i32, %c0_i32_0 : i32, i32
  }
  func.func @transform_3(%arg0: i32) -> (i32, i32) {
    %c0_i32 = arith.constant 0 : i32
    %c0_i32_0 = arith.constant 0 : i32
    %c0_i32_1 = arith.constant 0 : i32
    return %c0_i32, %c0_i32_0 : i32, i32
  }
  func.func @transform_4(%arg0: i32) -> (i32, i32) {
    %c0_i32 = arith.constant 0 : i32
    %c0_i32_0 = arith.constant 0 : i32
    %c0_i32_1 = arith.constant 0 : i32
    return %c0_i32, %c0_i32_0 : i32, i32
  }
  func.func @transform_5(%arg0: i32) -> (i32, i32) {
    %c0_i32 = arith.constant 0 : i32
    %c0_i32_0 = arith.constant 0 : i32
    %c0_i32_1 = arith.constant 0 : i32
    return %c0_i32, %c0_i32_0 : i32, i32
  }
  func.func @transform_6(%arg0: i32) -> (i32, i32) {
    %c0_i32 = arith.constant 0 : i32
    %c0_i32_0 = arith.constant 0 : i32
    %c0_i32_1 = arith.constant 0 : i32
    return %c0_i32, %c0_i32_0 : i32, i32
  }
  func.func @transform_7(%arg0: i32) -> (i32, i32) {
    %c0_i32 = arith.constant 0 : i32
    %c0_i32_0 = arith.constant 0 : i32
    return %arg0, %c0_i32 : i32, i32
  }
}

</mosaic_0001>

<llo_original>
// kernel: tpu_custom_call.1
$region0: #{tpu_custom_call.1}
  #allocation0 [shape = 'u32[]', space=smem, size = 0x4, offset = 0x4, fixed_abs, tag = 'smem constant byte address 0x4 - core index']
  #allocation1 [shape = 'u32[144,128]{1,0:T(1,128)}', space=vmem, size = 0x12000, scoped, tag = 'internal scratch']
  %s0 = inlined_call_operand.vmem [shape: f32[24,5], index: 0, kind: input, shape index: {}]
  %s1 = inlined_call_operand.vmem [shape: f32[5,64], index: 1, kind: input, shape index: {}]
  %s2 = inlined_call_operand.vmem [shape: f32[1,64], index: 2, kind: input, shape index: {}]
  %s3 = inlined_call_operand.vmem [shape: f32[64,64], index: 3, kind: input, shape index: {}]
  %s4 = inlined_call_operand.vmem [shape: f32[1,64], index: 4, kind: input, shape index: {}]
  %s5 = inlined_call_operand.vmem [shape: f32[64,32], index: 5, kind: input, shape index: {}]
  %s6 = inlined_call_operand.vmem [shape: f32[1,32], index: 6, kind: input, shape index: {}]
  %s7 = inlined_call_operand.hbm [shape: f32[24,32], index: 7, kind: output, shape index: {}]
  %s8 = sld [smem:[#allocation0]]
  $region38: #{tpu_custom_call.1} parent=0
    _
  %s10 = ssub.s32 1, %s8
  %s11 = scalar_select 0, %s10, %s8
  $region1: #{tpu_custom_call.1} parent=0
    #allocation2 [shape = 'u8[12288]{0}', space=vmem, size = 0x3000, scoped, tag = 'output window, operand 0, single buffered']
    #allocation3 [shape = 's32[1]{0}', space=sflag, size = 0x4, scoped, tag = 'scoped memory for tpu_custom_call.1']
    %12 = vsyncpa [#allocation3], 0
    // Predicated region
    $region2: #{tpu_custom_call.1} parent=1 // pred_check
      _
    $region3: #{tpu_custom_call.1} parent=1 // pred_check_branch
      %14 = sbr.rel (0) target = $region5
    $region4: #{tpu_custom_call.1} parent=1 // pred_region
      _
    $region5: #{tpu_custom_call.1} parent=1 // pred_fallthru
      _
    // Predicated region
    $region6: #{tpu_custom_call.1} parent=1 // pred_check
      _
    $region7: #{tpu_custom_call.1} parent=1 // pred_check_branch
      %16 = sbr.rel (0) target = $region9
    $region8: #{tpu_custom_call.1} parent=1 // pred_region
      _
    $region9: #{tpu_custom_call.1} parent=1 // pred_fallthru
      _
    // Predicated region
    $region10: #{tpu_custom_call.1} parent=1 // pred_check
      _
    $region11: #{tpu_custom_call.1} parent=1 // pred_check_branch
      %18 = sbr.rel (0) target = $region13
    $region12: #{tpu_custom_call.1} parent=1 // pred_region
      _
    $region13: #{tpu_custom_call.1} parent=1 // pred_fallthru
      _
    // Predicated region
    $region14: #{tpu_custom_call.1} parent=1 // pred_check
      _
    $region15: #{tpu_custom_call.1} parent=1 // pred_check_branch
      %20 = sbr.rel (0) target = $region17
    $region16: #{tpu_custom_call.1} parent=1 // pred_region
      _
    $region17: #{tpu_custom_call.1} parent=1 // pred_fallthru
      _
    // Predicated region
    $region18: #{tpu_custom_call.1} parent=1 // pred_check
      _
    $region19: #{tpu_custom_call.1} parent=1 // pred_check_branch
      %22 = sbr.rel (0) target = $region21
    $region20: #{tpu_custom_call.1} parent=1 // pred_region
      _
    $region21: #{tpu_custom_call.1} parent=1 // pred_fallthru
      _
    // Predicated region
    $region22: #{tpu_custom_call.1} parent=1 // pred_check
      _
    $region23: #{tpu_custom_call.1} parent=1 // pred_check_branch
      %24 = sbr.rel (0) target = $region25
    $region24: #{tpu_custom_call.1} parent=1 // pred_region
      _
    $region25: #{tpu_custom_call.1} parent=1 // pred_fallthru
      _
    // Predicated region
    $region26: #{tpu_custom_call.1} parent=1 // pred_check
      _
    $region27: #{tpu_custom_call.1} parent=1 // pred_check_branch
      %26 = sbr.rel (0) target = $region29
    $region28: #{tpu_custom_call.1} parent=1 // pred_region
      _
    $region29: #{tpu_custom_call.1} parent=1 // pred_fallthru
      _
    %v27 = vld [vmem:[%s0] sm:$0xff]
    %v28 = vld [vmem:[%s0 + $0x8] sm:$0xff]
    %v29 = vld [vmem:[%s0 + $0x10] sm:$0xff]
    %v30 = vld [vmem:[%s1] sm:$0x1f]
    %v31 = vld [vmem:[%s2] sm:$0x1]
    %v33 = vlaneseq
    %v34 = vshrl.u32 %v33, 7
    %v35 = vsub.s32 0, %v34
    %v36 = vrot.slane %v31, %v35
    %vm38 = vcmask 39936
    %v40 = vsel %vm38, %v27, 0
    %v43 = vsel %vm38, %v28, 0
    %v46 = vsel %vm38, %v29, 0
    %vm48 = vcmask 1044480
    %v50 = vsel %vm48, %v30, 0
    %52 = vmatprep.subr.mxu0 0.0
    %53 = vmatpush1.msra.mxu0 0.0
    %54 = vmatprep.subr.mxu0 0.0
    %55 = vmatpush1.msra.mxu0 0.0
    %56 = vmatprep.subr.mxu0 0.0
    %57 = vmatpush1.msra.mxu0 0.0
    %58 = vmatprep.subr.mxu0 0.0
    %59 = vmatpush1.msra.mxu0 0.0
    %60 = vmatprep.subr.mxu0 0.0
    %61 = vmatpush1.msra.mxu0 0.0
    %62 = vmatprep.subr.mxu0 0.0
    %63 = vmatpush1.msra.mxu0 0.0
    %64 = vmatprep.subr.mxu0 0.0
    %65 = vmatpush1.msra.mxu0 0.0
    %66 = vmatprep.subr.mxu0 0.0
    %67 = vmatpush1.msra.mxu0 0.0
    %68 = vmatprep.subr.mxu0 0.0
    %69 = vmatpush1.msra.mxu0 0.0
    %70 = vmatprep.subr.mxu0 0.0
    %71 = vmatpush1.msra.mxu0 0.0
    %72 = vmatprep.subr.mxu0 0.0
    %73 = vmatpush1.msra.mxu0 0.0
    %74 = vmatprep.subr.mxu0 0.0
    %75 = vmatpush1.msra.mxu0 0.0
    %76 = vmatprep.subr.mxu0 0.0
    %77 = vmatpush1.msra.mxu0 0.0
    %78 = vmatprep.subr.mxu0 0.0
    %79 = vmatpush1.msra.mxu0 0.0
    %80 = vmatprep.subr.mxu0 0.0
    %81 = vmatpush1.msra.mxu0 0.0
    %82 = vmatprep.subr.mxu0 0.0
    %83 = vmatpush1.msra.mxu0 %v50
    %84 = vmatprep.subr.mxu0 0.0
    %85 = vmatpush2.msra.mxu0 0.0
    %86 = vmatprep.subr.mxu0 0.0
    %87 = vmatpush2.msra.mxu0 0.0
    %88 = vmatprep.subr.mxu0 0.0
    %89 = vmatpush2.msra.mxu0 0.0
    %90 = vmatprep.subr.mxu0 0.0
    %91 = vmatpush2.msra.mxu0 0.0
    %92 = vmatprep.subr.mxu0 0.0
    %93 = vmatpush2.msra.mxu0 0.0
    %94 = vmatprep.subr.mxu0 0.0
    %95 = vmatpush2.msra.mxu0 0.0
    %96 = vmatprep.subr.mxu0 0.0
    %97 = vmatpush2.msra.mxu0 0.0
    %98 = vmatprep.subr.mxu0 0.0
    %99 = vmatpush2.msra.mxu0 0.0
    %100 = vmatprep.subr.mxu0 0.0
    %101 = vmatpush2.msra.mxu0 0.0
    %102 = vmatprep.subr.mxu0 0.0
    %103 = vmatpush2.msra.mxu0 0.0
    %104 = vmatprep.subr.mxu0 0.0
    %105 = vmatpush2.msra.mxu0 0.0
    %106 = vmatprep.subr.mxu0 0.0
    %107 = vmatpush2.msra.mxu0 0.0
    %108 = vmatprep.subr.mxu0 0.0
    %109 = vmatpush2.msra.mxu0 0.0
    %110 = vmatprep.subr.mxu0 0.0
    %111 = vmatpush2.msra.mxu0 0.0
    %112 = vmatprep.subr.mxu0 0.0
    %113 = vmatpush2.msra.mxu0 0.0
    %114 = vmatprep.subr.mxu0 0.0
    %115 = vmatpush2.msra.mxu0 0.0
    %116 = vmatprep.mubr.f32.mxu0 0.0
    %117 = vmatmul.mubr.f32.gmra.mxu0 %v40
    %v118 = vpop.f32.mrf.mxu0
    %v119 = vadd.f32 %v36, %v118
    %v120 = vpop.f32.mrf.mxu0
    %121 = vmatprep.mubr.f32.mxu0 0.0
    %122 = vmatmul.mubr.f32.gmra.mxu0 %v43
    %v123 = vpop.f32.mrf.mxu0
    %v124 = vadd.f32 %v36, %v123
    %v125 = vpop.f32.mrf.mxu0
    %126 = vmatprep.mubr.f32.mxu0 0.0
    %127 = vmatmul.mubr.f32.gmra.mxu0 %v46
    %v128 = vpop.f32.mrf.mxu0
    %v129 = vadd.f32 %v36, %v128
    %v130 = vpop.f32.mrf.mxu0
    %131 = vdwg.mxu0
    %v132 = vtanh.pop %v119
    %v133 = vtanh.pop %v124
    %v134 = vtanh.pop %v129
    %v135 = vld [vmem:[%s3] sm:$0xff]
    %v136 = vld [vmem:[%s3 + $0x8] sm:$0xff]
    %v137 = vld [vmem:[%s3 + $0x10] sm:$0xff]
    %v138 = vld [vmem:[%s3 + $0x18] sm:$0xff]
    %v139 = vld [vmem:[%s3 + $0x20] sm:$0xff]
    %v140 = vld [vmem:[%s3 + $0x28] sm:$0xff]
    %v141 = vld [vmem:[%s3 + $0x30] sm:$0xff]
    %v142 = vld [vmem:[%s3 + $0x38] sm:$0xff]
    %v143 = vld [vmem:[%s4] sm:$0x1]
    %v145 = vlaneseq
    %v146 = vshrl.u32 %v145, 7
    %v147 = vsub.s32 0, %v146
    %v148 = vrot.slane %v143, %v147
    %vm150 = vcmask 523264
    %v152 = vsel %vm150, %v132, 0
    %v155 = vsel %vm150, %v133, 0
    %v158 = vsel %vm150, %v134, 0
    %160 = vmatprep.subr.mxu0 0.0
    %161 = vmatpush1.msra.mxu0 0.0
    %162 = vmatprep.subr.mxu0 0.0
    %163 = vmatpush1.msra.mxu0 0.0
    %164 = vmatprep.subr.mxu0 0.0
    %165 = vmatpush1.msra.mxu0 0.0
    %166 = vmatprep.subr.mxu0 0.0
    %167 = vmatpush1.msra.mxu0 0.0
    %168 = vmatprep.subr.mxu0 0.0
    %169 = vmatpush1.msra.mxu0 0.0
    %170 = vmatprep.subr.mxu0 0.0
    %171 = vmatpush1.msra.mxu0 0.0
    %172 = vmatprep.subr.mxu0 0.0
    %173 = vmatpush1.msra.mxu0 0.0
    %174 = vmatprep.subr.mxu0 0.0
    %175 = vmatpush1.msra.mxu0 0.0
    %176 = vmatprep.subr.mxu0 0.0
    %177 = vmatpush1.msra.mxu0 %v142
    %178 = vmatprep.subr.mxu0 0.0
    %179 = vmatpush1.msra.mxu0 %v141
    %180 = vmatprep.subr.mxu0 0.0
    %181 = vmatpush1.msra.mxu0 %v140
    %182 = vmatprep.subr.mxu0 0.0
    %183 = vmatpush1.msra.mxu0 %v139
    %184 = vmatprep.subr.mxu0 0.0
    %185 = vmatpush1.msra.mxu0 %v138
    %186 = vmatprep.subr.mxu0 0.0
    %187 = vmatpush1.msra.mxu0 %v137
    %188 = vmatprep.subr.mxu0 0.0
    %189 = vmatpush1.msra.mxu0 %v136
    %190 = vmatprep.subr.mxu0 0.0
    %191 = vmatpush1.msra.mxu0 %v135
    %192 = vmatprep.subr.mxu0 0.0
    %193 = vmatpush2.msra.mxu0 0.0
    %194 = vmatprep.subr.mxu0 0.0
    %195 = vmatpush2.msra.mxu0 0.0
    %196 = vmatprep.subr.mxu0 0.0
    %197 = vmatpush2.msra.mxu0 0.0
    %198 = vmatprep.subr.mxu0 0.0
    %199 = vmatpush2.msra.mxu0 0.0
    %200 = vmatprep.subr.mxu0 0.0
    %201 = vmatpush2.msra.mxu0 0.0
    %202 = vmatprep.subr.mxu0 0.0
    %203 = vmatpush2.msra.mxu0 0.0
    %204 = vmatprep.subr.mxu0 0.0
    %205 = vmatpush2.msra.mxu0 0.0
    %206 = vmatprep.subr.mxu0 0.0
    %207 = vmatpush2.msra.mxu0 0.0
    %208 = vmatprep.subr.mxu0 0.0
    %209 = vmatpush2.msra.mxu0 0.0
    %210 = vmatprep.subr.mxu0 0.0
    %211 = vmatpush2.msra.mxu0 0.0
    %212 = vmatprep.subr.mxu0 0.0
    %213 = vmatpush2.msra.mxu0 0.0
    %214 = vmatprep.subr.mxu0 0.0
    %215 = vmatpush2.msra.mxu0 0.0
    %216 = vmatprep.subr.mxu0 0.0
    %217 = vmatpush2.msra.mxu0 0.0
    %218 = vmatprep.subr.mxu0 0.0
    %219 = vmatpush2.msra.mxu0 0.0
    %220 = vmatprep.subr.mxu0 0.0
    %221 = vmatpush2.msra.mxu0 0.0
    %222 = vmatprep.subr.mxu0 0.0
    %223 = vmatpush2.msra.mxu0 0.0
    %224 = vmatprep.mubr.f32.mxu0 0.0
    %225 = vmatmul.mubr.f32.gmra.mxu0 %v152
    %v226 = vpop.f32.mrf.mxu0
    %v227 = vadd.f32 %v148, %v226
    %v228 = vpop.f32.mrf.mxu0
    %229 = vmatprep.mubr.f32.mxu0 0.0
    %230 = vmatmul.mubr.f32.gmra.mxu0 %v155
    %v231 = vpop.f32.mrf.mxu0
    %v232 = vadd.f32 %v148, %v231
    %v233 = vpop.f32.mrf.mxu0
    %234 = vmatprep.mubr.f32.mxu0 0.0
    %235 = vmatmul.mubr.f32.gmra.mxu0 %v158
    %v236 = vpop.f32.mrf.mxu0
    %v237 = vadd.f32 %v148, %v236
    %v238 = vpop.f32.mrf.mxu0
    %239 = vdwg.mxu0
    %v240 = vtanh.pop %v227
    %v241 = vtanh.pop %v232
    %v242 = vtanh.pop %v237
    %v243 = vld [vmem:[%s5] sm:$0xff]
    %v244 = vld [vmem:[%s5 + $0x8] sm:$0xff]
    %v245 = vld [vmem:[%s5 + $0x10] sm:$0xff]
    %v246 = vld [vmem:[%s5 + $0x18] sm:$0xff]
    %v247 = vld [vmem:[%s5 + $0x20] sm:$0xff]
    %v248 = vld [vmem:[%s5 + $0x28] sm:$0xff]
    %v249 = vld [vmem:[%s5 + $0x30] sm:$0xff]
    %v250 = vld [vmem:[%s5 + $0x38] sm:$0xff]
    %v251 = vld [vmem:[%s6] sm:$0x1]
    %v253 = vlaneseq
    %v254 = vshrl.u32 %v253, 7
    %v255 = vsub.s32 0, %v254
    %v256 = vrot.slane %v251, %v255
    %v259 = vsel %vm150, %v240, 0
    %v262 = vsel %vm150, %v241, 0
    %v265 = vsel %vm150, %v242, 0
    %267 = vmatprep.subr.mxu0 0.0
    %268 = vmatpush1.msra.mxu0 0.0
    %269 = vmatprep.subr.mxu0 0.0
    %270 = vmatpush1.msra.mxu0 0.0
    %271 = vmatprep.subr.mxu0 0.0
    %272 = vmatpush1.msra.mxu0 0.0
    %273 = vmatprep.subr.mxu0 0.0
    %274 = vmatpush1.msra.mxu0 0.0
    %275 = vmatprep.subr.mxu0 0.0
    %276 = vmatpush1.msra.mxu0 0.0
    %277 = vmatprep.subr.mxu0 0.0
    %278 = vmatpush1.msra.mxu0 0.0
    %279 = vmatprep.subr.mxu0 0.0
    %280 = vmatpush1.msra.mxu0 0.0
    %281 = vmatprep.subr.mxu0 0.0
    %282 = vmatpush1.msra.mxu0 0.0
    %283 = vmatprep.subr.mxu0 0.0
    %284 = vmatpush1.msra.mxu0 %v250
    %285 = vmatprep.subr.mxu0 0.0
    %286 = vmatpush1.msra.mxu0 %v249
    %287 = vmatprep.subr.mxu0 0.0
    %288 = vmatpush1.msra.mxu0 %v248
    %289 = vmatprep.subr.mxu0 0.0
    %290 = vmatpush1.msra.mxu0 %v247
    %291 = vmatprep.subr.mxu0 0.0
    %292 = vmatpush1.msra.mxu0 %v246
    %293 = vmatprep.subr.mxu0 0.0
    %294 = vmatpush1.msra.mxu0 %v245
    %295 = vmatprep.subr.mxu0 0.0
    %296 = vmatpush1.msra.mxu0 %v244
    %297 = vmatprep.subr.mxu0 0.0
    %298 = vmatpush1.msra.mxu0 %v243
    %299 = vmatprep.subr.mxu0 0.0
    %300 = vmatpush2.msra.mxu0 0.0
    %301 = vmatprep.subr.mxu0 0.0
    %302 = vmatpush2.msra.mxu0 0.0
    %303 = vmatprep.subr.mxu0 0.0
    %304 = vmatpush2.msra.mxu0 0.0
    %305 = vmatprep.subr.mxu0 0.0
    %306 = vmatpush2.msra.mxu0 0.0
    %307 = vmatprep.subr.mxu0 0.0
    %308 = vmatpush2.msra.mxu0 0.0
    %309 = vmatprep.subr.mxu0 0.0
    %310 = vmatpush2.msra.mxu0 0.0
    %311 = vmatprep.subr.mxu0 0.0
    %312 = vmatpush2.msra.mxu0 0.0
    %313 = vmatprep.subr.mxu0 0.0
    %314 = vmatpush2.msra.mxu0 0.0
    %315 = vmatprep.subr.mxu0 0.0
    %316 = vmatpush2.msra.mxu0 0.0
    %317 = vmatprep.subr.mxu0 0.0
    %318 = vmatpush2.msra.mxu0 0.0
    %319 = vmatprep.subr.mxu0 0.0
    %320 = vmatpush2.msra.mxu0 0.0
    %321 = vmatprep.subr.mxu0 0.0
    %322 = vmatpush2.msra.mxu0 0.0
    %323 = vmatprep.subr.mxu0 0.0
    %324 = vmatpush2.msra.mxu0 0.0
    %325 = vmatprep.subr.mxu0 0.0
    %326 = vmatpush2.msra.mxu0 0.0
    %327 = vmatprep.subr.mxu0 0.0
    %328 = vmatpush2.msra.mxu0 0.0
    %329 = vmatprep.subr.mxu0 0.0
    %330 = vmatpush2.msra.mxu0 0.0
    %331 = vmatprep.mubr.f32.mxu0 0.0
    %332 = vmatmul.mubr.f32.gmra.mxu0 %v259
    %v333 = vpop.f32.mrf.mxu0
    %v334 = vadd.f32 %v256, %v333
    %v335 = vpop.f32.mrf.mxu0
    %336 = vmatprep.mubr.f32.mxu0 0.0
    %337 = vmatmul.mubr.f32.gmra.mxu0 %v262
    %v338 = vpop.f32.mrf.mxu0
    %v339 = vadd.f32 %v256, %v338
    %v340 = vpop.f32.mrf.mxu0
    %341 = vmatprep.mubr.f32.mxu0 0.0
    %342 = vmatmul.mubr.f32.gmra.mxu0 %v265
    %v343 = vpop.f32.mrf.mxu0
    %v344 = vadd.f32 %v256, %v343
    %v345 = vpop.f32.mrf.mxu0
    %346 = vdwg.mxu0
    %v347 = vtanh.pop %v334
    %v348 = vtanh.pop %v339
    %v349 = vtanh.pop %v344
    %vm350 = vcmask 261120
    %351 = vst.msk [vmem:[#allocation2] sm:$0xff] %vm350, %v347
    %352 = vst.msk [vmem:[#allocation2 + $0x8] sm:$0xff] %vm350, %v348
    %353 = vst.msk [vmem:[#allocation2 + $0x10] sm:$0xff] %vm350, %v349
    // Predicated region
    $region30: #{tpu_custom_call.1} parent=1 // pred_check
      _
    $region31: #{tpu_custom_call.1} parent=1 // pred_check_branch
      %355 = sbr.rel (0) target = $region33
    $region32: #{tpu_custom_call.1} parent=1 // pred_region
      %s357 = ssub.s32 384, 384
      %358 = vsyncadd [#allocation3], %s357
      %s359 = sshll.u32 [#allocation2], 4
      %s360 = int_to_ptr.vmem [resolvable:$true] %s359
      %365 = dma.vmem_to_hbm [thread:$0]  %s360, 384, %s7, [#allocation3], 128, 128, 8
    $region33: #{tpu_custom_call.1} parent=1 // pred_fallthru
      _
    // Predicated region
    $region34: #{tpu_custom_call.1} parent=1 // pred_check
      _
    $region35: #{tpu_custom_call.1} parent=1 // pred_check_branch
      %367 = sbr.rel (0) target = $region37
    $region36: #{tpu_custom_call.1} parent=1 // pred_region
      %368 = dma.done [#allocation3], 384
    $region37: #{tpu_custom_call.1} parent=1 // pred_fallthru
      _
    %369 = vsyncpa [#allocation3], 1

</llo_original>
